<compile_context>
chip_gen: v7x
topology: tpu7x:2x2x1
jax: 0.10.0
libtpu: 0.0.40
codegen_flags: <defaults>
</compile_context>

<pallas_src>
import functools

import jax
import jax.numpy as jnp
from jax.experimental import pallas as pl
from jax.experimental.pallas import tpu as pltpu


def _round_up(n, m):
    return ((n + m - 1) // m) * m


def _tpu_vmem_capacity_bytes():
    """Physical VMEM per core; conservative 64 MiB fallback if the query fails."""
    try:
        info = pltpu.get_tpu_info()
        cap = int(getattr(info, "vmem_capacity_bytes", 0))
        if cap > 0:
            return cap
    except Exception:  # query unavailable in this environment -> be conservative
        pass
    return 64 << 20


def projection_head_kernel(x_ref, w1_ref, b1_ref, w2_ref, b2_ref, o_ref,
                           *, compute_dtype, h_chunk):
    """y = relu(x @ W1 + b1) @ W2 + b2 for one batch tile, fused in VMEM."""
    x = x_ref[...].astype(compute_dtype)  # cast in-kernel: no extra HBM pass over x
    h_p = w1_ref.shape[1]

    if h_chunk is None or h_chunk >= h_p:
        # Full-H path: MXU matmul (f32 accumulate), f32 bias+ReLU on the VPU,
        # down-cast only at the second MXU operand boundary.
        h = jnp.dot(x, w1_ref[...], preferred_element_type=jnp.float32)
        h = jnp.maximum(h + b1_ref[...], 0.0).astype(compute_dtype)
        y = jnp.dot(h, w2_ref[...], preferred_element_type=jnp.float32)
    else:
        # H-chunked path: live f32 intermediate is only (block_b, h_chunk) and
        # the two matmuls' MXU pushes interleave (matters under v7x's 64 MiB
        # VMEM for large hidden dims). All offsets are static -> free slices.
        y = jnp.zeros((x.shape[0], w2_ref.shape[1]), jnp.float32)
        off = 0
        while off < h_p:
            cur = min(h_chunk, h_p - off)
            hc = jnp.dot(x, w1_ref[:, pl.ds(off, cur)],
                         preferred_element_type=jnp.float32)
            hc = jnp.maximum(hc + b1_ref[:, pl.ds(off, cur)], 0.0)
            hc = hc.astype(compute_dtype)
            y = y + jnp.dot(hc, w2_ref[pl.ds(off, cur), :],
                            preferred_element_type=jnp.float32)
            off += cur

    o_ref[...] = (y + b2_ref[...]).astype(o_ref.dtype)


def _build_specs(block_b, d_in, h_p, d_out_p, single_buffer_weights):
    inv_kwargs = {}
    if single_buffer_weights and hasattr(pl, "Buffered"):
        # Grid-invariant operands: halve their resident VMEM.
        inv_kwargs = dict(pipeline_mode=pl.Buffered(1))
    in_specs = [
        pl.BlockSpec((block_b, d_in), lambda i: (i, 0)),               # x tile (pipelined)
        pl.BlockSpec((d_in, h_p), lambda i: (0, 0), **inv_kwargs),     # W1 (resident)
        pl.BlockSpec((1, h_p), lambda i: (0, 0), **inv_kwargs),        # b1
        pl.BlockSpec((h_p, d_out_p), lambda i: (0, 0), **inv_kwargs),  # W2 (resident)
        pl.BlockSpec((1, d_out_p), lambda i: (0, 0), **inv_kwargs),    # b2
    ]
    out_specs = pl.BlockSpec((block_b, d_out_p), lambda i: (i, 0))
    return in_specs, out_specs


def projection_head(x, w1, b1, w2, b2, *, block_b=None,
                    compute_dtype=jnp.bfloat16, out_dtype=None):
    """x: [B, D_in]; w1: [D_in, H]; b1: [H]; w2: [H, D_out]; b2: [D_out].

    compute_dtype=jnp.float32 gives exact-precision Linear semantics; the
    bfloat16 default uses bf16 MXU operands with f32 accumulation.
    """
    B, D_in = x.shape
    H = w1.shape[1]
    D_out = w2.shape[1]
    out_dtype = jnp.dtype(out_dtype if out_dtype is not None else x.dtype)
    cdt = jnp.dtype(compute_dtype)

    # ---- generation-aware budgets -------------------------------------------
    vmem_cap = _tpu_vmem_capacity_bytes()
    budget = vmem_cap - (8 << 20)          # headroom for compiler-internal scratch
    small_vmem = vmem_cap <= (80 << 20)    # v7x-like: 64 MiB VMEM, 2 TensorCores

    # Lane-dense padding of the *weight* feature dims only (x is passed as-is:
    # its last block dim equals the full D_in, which Pallas permits unpadded).
    h_p = _round_up(H, 128)
    d_out_p = _round_up(D_out, 128)

    # ---- batch tile -----------------------------------------------------------
    if block_b is None:
        block_b = 256 if small_vmem else 512
    # On 2-TC chips make sure the ("parallel",) batch grid has >= 2 steps so
    # both TensorCores get work when the batch would otherwise fit one tile.
    if small_vmem and B > 8 and B <= block_b:
        block_b = _round_up(pl.cdiv(B, 2), 8)
    block_b = max(8, _round_up(min(block_b, _round_up(B, 8)), 8))

    # ---- VMEM footprint, H chunking, weight buffering ------------------------
    weight_bytes = (D_in * h_p + h_p * d_out_p) * cdt.itemsize
    single_buffer_weights = weight_bytes > (4 << 20)

    h_chunk = None
    if h_p > 512 and block_b * h_p * (4 + cdt.itemsize) > (6 << 20):
        h_chunk = 512
    # TODO(synk): when weight_bytes alone exceeds `budget` (very large hidden
    # dims on v7x), stream W1/W2 via a reduction grid axis / pltpu.emit_pipeline
    # instead of holding them resident.

    def footprint(bb):
        hc = h_chunk if h_chunk is not None else h_p
        wbuf = 1 if single_buffer_weights else 2
        return (
            2 * bb * D_in * x.dtype.itemsize          # x tiles (double-buffered)
            + 2 * bb * d_out_p * out_dtype.itemsize   # out tiles (double-buffered)
            + wbuf * weight_bytes                     # resident weights
            + wbuf * (h_p + d_out_p) * 4              # resident biases (f32)
            + bb * D_in * cdt.itemsize                # in-kernel cast copy of x tile
            + bb * hc * (4 + cdt.itemsize)            # f32 hidden + compute-dtype copy
            + bb * d_out_p * 4                        # f32 output accumulator
        )

    while block_b > 8 and footprint(block_b) > budget:
        block_b = max(8, _round_up(block_b // 2, 8))

    vmem_limit = int(min(max(footprint(block_b) * 2 + (4 << 20), 32 << 20), budget))

    # ---- weight prep (one-time, batch-independent; zero-pad preserves Linear) -
    w1c = jnp.pad(w1.astype(cdt), ((0, 0), (0, h_p - H)))
    w2c = jnp.pad(w2.astype(cdt), ((0, h_p - H), (0, d_out_p - D_out)))
    b1c = jnp.pad(b1.astype(jnp.float32), (0, h_p - H)).reshape(1, h_p)
    b2c = jnp.pad(b2.astype(jnp.float32), (0, d_out_p - D_out)).reshape(1, d_out_p)

    kernel = functools.partial(projection_head_kernel,
                               compute_dtype=cdt, h_chunk=h_chunk)

    def call(single_buf):
        in_specs, out_specs = _build_specs(block_b, D_in, h_p, d_out_p, single_buf)
        return pl.pallas_call(
            kernel,
            out_shape=jax.ShapeDtypeStruct((B, d_out_p), out_dtype),
            grid_spec=pltpu.PrefetchScalarGridSpec(
                num_scalar_prefetch=0,
                grid=(pl.cdiv(B, block_b),),   # ragged last tile handled by Pallas
                in_specs=in_specs,
                out_specs=out_specs,
            ),
            compiler_params=pltpu.CompilerParams(
                dimension_semantics=("parallel",),
                vmem_limit_bytes=vmem_limit,
            ),
        )(x, w1c, b1c, w2c, b2c)

    if single_buffer_weights:
        lowering_errors = (TypeError, NotImplementedError)
        if hasattr(pltpu, "LoweringException"):
            lowering_errors = lowering_errors + (pltpu.LoweringException,)
        try:
            out_p = call(True)
        except lowering_errors:
            # pl.Buffered(1) unsupported on this jax version: default buffering.
            out_p = call(False)
    else:
        out_p = call(False)

    return out_p if d_out_p == D_out else out_p[:, :D_out]


def _init_linear(key, in_features, out_features, dtype=jnp.float32):
    """Deterministic init mimicking torch.nn.Linear (uniform +/- 1/sqrt(in))."""
    kw, kb = jax.random.split(key)
    bound = 1.0 / (in_features ** 0.5)
    # torch stores weight as (out, in); we keep the transposed (in, out) layout.
    w = jax.random.uniform(kw, (in_features, out_features), dtype,
                           minval=-bound, maxval=bound)
    b = jax.random.uniform(kb, (out_features,), dtype,
                           minval=-bound, maxval=bound)
    return w, b


if __name__ == "__main__":
    # Small demo shapes consistent with the module: x is [batch, input_dim].
    batch, input_dim, hidden_dim, output_dim = 8, 32, 128, 128

    key = jax.random.PRNGKey(0)
    kx, k1, k2 = jax.random.split(key, 3)

    x = jax.random.normal(kx, (batch, input_dim), jnp.float32)
    w1, b1 = _init_linear(k1, input_dim, hidden_dim)
    w2, b2 = _init_linear(k2, hidden_dim, output_dim)

    out = projection_head(x, w1, b1, w2, b2)
    out = jax.block_until_ready(out)
    assert out.shape == (batch, output_dim)
    assert out.dtype == x.dtype

    # Reference 1: mirrors the kernel's bf16-operand / f32-accumulate math.
    xb = x.astype(jnp.bfloat16)
    w1b = w1.astype(jnp.bfloat16)
    w2b = w2.astype(jnp.bfloat16)
    h_ref = jnp.maximum(
        jnp.dot(xb, w1b, preferred_element_type=jnp.float32) + b1, 0.0)
    ref_bf16 = (jnp.dot(h_ref.astype(jnp.bfloat16), w2b,
                        preferred_element_type=jnp.float32) + b2)
    assert jnp.allclose(out, ref_bf16.astype(out.dtype), atol=2e-3, rtol=2e-3)

    # Reference 2: pure f32 forward semantics (loose tolerance: bf16 operands).
    ref_f32 = jnp.maximum(x @ w1 + b1, 0.0) @ w2 + b2
    assert jnp.allclose(out, ref_f32, atol=5e-2, rtol=5e-2)

    # Exact-precision path for precision-sensitive callers.
    out_f32 = jax.block_until_ready(
        projection_head(x, w1, b1, w2, b2, compute_dtype=jnp.float32))
    assert jnp.allclose(out_f32, ref_f32, atol=1e-4, rtol=1e-4)

    print("KERNEL_OK")
</pallas_src>

<mosaic_0001>
module attributes {stable_mosaic.version = 11 : i64} {
  func.func @projection_head_kernel(%arg0: i32, %arg1: memref<8x32xf32, #tpu.memory_space<vmem>>, %arg2: memref<32x128xbf16, #tpu.memory_space<vmem>>, %arg3: memref<1x128xf32, #tpu.memory_space<vmem>>, %arg4: memref<128x128xbf16, #tpu.memory_space<vmem>>, %arg5: memref<1x128xf32, #tpu.memory_space<vmem>>, %arg6: memref<8x128xf32, #tpu.memory_space<vmem>>) attributes {dimension_semantics = [#tpu.dimension_semantics<parallel>], iteration_bounds = array<i64: 1>, scalar_prefetch = 0 : i64, scratch_operands = 0 : i64, tpu.core_type = #tpu.core_type<tc>, window_params = [{transform_indices = @transform_0, window_bounds = array<i64: 8, 32>}, {pipeline_mode = #tpu.pipeline_mode<synchronous>, transform_indices = @transform_1, window_bounds = array<i64: 32, 128>}, {pipeline_mode = #tpu.pipeline_mode<synchronous>, transform_indices = @transform_2, window_bounds = array<i64: 1, 128>}, {pipeline_mode = #tpu.pipeline_mode<synchronous>, transform_indices = @transform_3, window_bounds = array<i64: 128, 128>}, {pipeline_mode = #tpu.pipeline_mode<synchronous>, transform_indices = @transform_4, window_bounds = array<i64: 1, 128>}, {transform_indices = @transform_5, window_bounds = array<i64: 8, 128>}]} {
    %c0 = arith.constant 0 : index
    %c0_0 = arith.constant 0 : index
    %0 = vector.load %arg1[%c0, %c0_0] : memref<8x32xf32, #tpu.memory_space<vmem>>, vector<8x32xf32>
    %1 = arith.truncf %0 : vector<8x32xf32> to vector<8x32xbf16>
    %c0_1 = arith.constant 0 : index
    %c0_2 = arith.constant 0 : index
    %2 = vector.load %arg2[%c0_1, %c0_2] : memref<32x128xbf16, #tpu.memory_space<vmem>>, vector<32x128xbf16>
    %cst = arith.constant dense<0.000000e+00> : vector<8x128xf32>
    %3 = tpu.matmul %1, %2, %cst {dimension_numbers = #tpu.dot_dimension_numbers<[1], [0], [0], [1], [0, 0, 1, 1], [], []>} : vector<8x32xbf16>, vector<32x128xbf16>, vector<8x128xf32> -> vector<8x128xf32>
    %c0_3 = arith.constant 0 : index
    %c0_4 = arith.constant 0 : index
    %4 = vector.load %arg3[%c0_3, %c0_4] : memref<1x128xf32, #tpu.memory_space<vmem>>, vector<1x128xf32>
    %5 = vector.broadcast %4 : vector<1x128xf32> to vector<8x128xf32>
    %6 = arith.addf %3, %5 : vector<8x128xf32>
    %cst_5 = arith.constant 0.000000e+00 : f32
    %7 = vector.broadcast %cst_5 : f32 to vector<8x128xf32>
    %8 = arith.maximumf %6, %7 : vector<8x128xf32>
    %9 = arith.truncf %8 : vector<8x128xf32> to vector<8x128xbf16>
    %c0_6 = arith.constant 0 : index
    %c0_7 = arith.constant 0 : index
    %10 = vector.load %arg4[%c0_6, %c0_7] : memref<128x128xbf16, #tpu.memory_space<vmem>>, vector<128x128xbf16>
    %cst_8 = arith.constant dense<0.000000e+00> : vector<8x128xf32>
    %11 = tpu.matmul %9, %10, %cst_8 {dimension_numbers = #tpu.dot_dimension_numbers<[1], [0], [0], [1], [0, 0, 1, 1], [], []>} : vector<8x128xbf16>, vector<128x128xbf16>, vector<8x128xf32> -> vector<8x128xf32>
    %c0_9 = arith.constant 0 : index
    %c0_10 = arith.constant 0 : index
    %12 = vector.load %arg5[%c0_9, %c0_10] : memref<1x128xf32, #tpu.memory_space<vmem>>, vector<1x128xf32>
    %13 = vector.broadcast %12 : vector<1x128xf32> to vector<8x128xf32>
    %14 = arith.addf %11, %13 : vector<8x128xf32>
    %c0_11 = arith.constant 0 : index
    %c0_12 = arith.constant 0 : index
    %15 = vector.load %arg6[%c0_11, %c0_12] : memref<8x128xf32, #tpu.memory_space<vmem>>, vector<8x128xf32>
    tpu.vector_store %arg6[%c0_11, %c0_12], %14 {strides = array<i32>} : memref<8x128xf32, #tpu.memory_space<vmem>>, vector<8x128xf32>,
    return
  }
  func.func @transform_0(%arg0: i32) -> (i32, i32) {
    %c0_i32 = arith.constant 0 : i32
    %c0_i32_0 = arith.constant 0 : i32
    return %arg0, %c0_i32 : i32, i32
  }
  func.func @transform_1(%arg0: i32) -> (i32, i32) {
    %c0_i32 = arith.constant 0 : i32
    %c0_i32_0 = arith.constant 0 : i32
    %c0_i32_1 = arith.constant 0 : i32
    return %c0_i32, %c0_i32_0 : i32, i32
  }
  func.func @transform_2(%arg0: i32) -> (i32, i32) {
    %c0_i32 = arith.constant 0 : i32
    %c0_i32_0 = arith.constant 0 : i32
    %c0_i32_1 = arith.constant 0 : i32
    return %c0_i32, %c0_i32_0 : i32, i32
  }
  func.func @transform_3(%arg0: i32) -> (i32, i32) {
    %c0_i32 = arith.constant 0 : i32
    %c0_i32_0 = arith.constant 0 : i32
    %c0_i32_1 = arith.constant 0 : i32
    return %c0_i32, %c0_i32_0 : i32, i32
  }
  func.func @transform_4(%arg0: i32) -> (i32, i32) {
    %c0_i32 = arith.constant 0 : i32
    %c0_i32_0 = arith.constant 0 : i32
    %c0_i32_1 = arith.constant 0 : i32
    return %c0_i32, %c0_i32_0 : i32, i32
  }
  func.func @transform_5(%arg0: i32) -> (i32, i32) {
    %c0_i32 = arith.constant 0 : i32
    %c0_i32_0 = arith.constant 0 : i32
    return %arg0, %c0_i32 : i32, i32
  }
}

</mosaic_0001>

<llo_original>
// kernel: tpu_custom_call.1
$region0: #{tpu_custom_call.1}
  #allocation0 [shape = 'u32[]', space=smem, size = 0x4, offset = 0x4, fixed_abs, tag = 'smem constant byte address 0x4 - core index']
  #allocation1 [shape = 'u32[144,128]{1,0:T(1,128)}', space=vmem, size = 0x12000, scoped, tag = 'internal scratch']
  %s0 = inlined_call_operand.hbm [shape: f32[8,32], index: 0, kind: input, shape index: {}]
  %s1 = inlined_call_operand.hbm [shape: bf16[32,128], index: 1, kind: input, shape index: {}]
  %s2 = inlined_call_operand.vmem [shape: f32[1,128], index: 2, kind: input, shape index: {}]
  %s3 = inlined_call_operand.hbm [shape: bf16[128,128], index: 3, kind: input, shape index: {}]
  %s4 = inlined_call_operand.vmem [shape: f32[1,128], index: 4, kind: input, shape index: {}]
  %s5 = inlined_call_operand.hbm [shape: f32[8,128], index: 5, kind: output, shape index: {}]
  %s6 = sld [smem:[#allocation0]]
  $region42: #{tpu_custom_call.1} parent=0
    _
  %s8 = ssub.s32 1, %s6
  %s9 = scalar_select 0, %s8, %s6
  $region1: #{tpu_custom_call.1} parent=0
    #allocation2 [shape = 'u8[4096]{0}', space=vmem, size = 0x1000, scoped, tag = 'input window, operand 0, single buffered']
    #allocation3 [shape = 's32[1]{0}', space=sflag, size = 0x4, scoped, tag = 'scoped memory for tpu_custom_call.1']
    #allocation4 [shape = 's32[1]{0}', space=sflag, size = 0x4, scoped, tag = 'scoped memory for tpu_custom_call.1']
    #allocation5 [shape = 'u8[8192]{0}', space=vmem, size = 0x2000, scoped, tag = 'input window, operand 1, single buffered']
    #allocation6 [shape = 's32[1]{0}', space=sflag, size = 0x4, scoped, tag = 'scoped memory for tpu_custom_call.1']
    #allocation7 [shape = 'u8[32768]{0}', space=vmem, size = 0x8000, scoped, tag = 'input window, operand 3, single buffered']
    #allocation8 [shape = 'u8[4096]{0}', space=vmem, size = 0x1000, scoped, tag = 'output window, operand 0, single buffered']
    %10 = vsyncpa [#allocation3], 0
    %11 = vsyncpa [#allocation6], 0
    %12 = vsyncpa [#allocation4], 0
    // Predicated region
    $region2: #{tpu_custom_call.1} parent=1 // pred_check
      _
    $region3: #{tpu_custom_call.1} parent=1 // pred_check_branch
      %14 = sbr.rel (0) target = $region5
    $region4: #{tpu_custom_call.1} parent=1 // pred_region
      %s16 = ssub.s32 128, 128
      %17 = vsyncadd [#allocation3], %s16
      %s19 = sshll.u32 [#allocation2], 4
      %s20 = int_to_ptr.vmem [resolvable:$true] %s19
      %22 = dma.hbm_to_vmem [thread:$0]  %s0, 128, %s20, [#allocation3]
    $region5: #{tpu_custom_call.1} parent=1 // pred_fallthru
      _
    // Predicated region
    $region6: #{tpu_custom_call.1} parent=1 // pred_check
      _
    $region7: #{tpu_custom_call.1} parent=1 // pred_check_branch
      %24 = sbr.rel (0) target = $region9
    $region8: #{tpu_custom_call.1} parent=1 // pred_region
      %s26 = ssub.s32 256, 256
      %27 = vsyncadd [#allocation6], %s26
      %s28 = sshll.u32 [#allocation5], 4
      %s29 = int_to_ptr.vmem [resolvable:$true] %s28
      %34 = dma.hbm_to_vmem [thread:$0]  %s1, 256, %s29, [#allocation6], 64, 64, 4
    $region9: #{tpu_custom_call.1} parent=1 // pred_fallthru
      _
    // Predicated region
    $region10: #{tpu_custom_call.1} parent=1 // pred_check
      _
    $region11: #{tpu_custom_call.1} parent=1 // pred_check_branch
      %36 = sbr.rel (0) target = $region13
    $region12: #{tpu_custom_call.1} parent=1 // pred_region
      _
    $region13: #{tpu_custom_call.1} parent=1 // pred_fallthru
      _
    // Predicated region
    $region14: #{tpu_custom_call.1} parent=1 // pred_check
      _
    $region15: #{tpu_custom_call.1} parent=1 // pred_check_branch
      %38 = sbr.rel (0) target = $region17
    $region16: #{tpu_custom_call.1} parent=1 // pred_region
      %s40 = ssub.s32 1024, 1024
      %41 = vsyncadd [#allocation6], %s40
      %s42 = sshll.u32 [#allocation7], 4
      %s43 = int_to_ptr.vmem [resolvable:$true] %s42
      %48 = dma.hbm_to_vmem [thread:$0]  %s3, 1024, %s43, [#allocation6], 64, 64, 4
    $region17: #{tpu_custom_call.1} parent=1 // pred_fallthru
      _
    // Predicated region
    $region18: #{tpu_custom_call.1} parent=1 // pred_check
      _
    $region19: #{tpu_custom_call.1} parent=1 // pred_check_branch
      %50 = sbr.rel (0) target = $region21
    $region20: #{tpu_custom_call.1} parent=1 // pred_region
      _
    $region21: #{tpu_custom_call.1} parent=1 // pred_fallthru
      _
    // Predicated region
    $region22: #{tpu_custom_call.1} parent=1 // pred_check
      _
    $region23: #{tpu_custom_call.1} parent=1 // pred_check_branch
      %52 = sbr.rel (0) target = $region25
    $region24: #{tpu_custom_call.1} parent=1 // pred_region
      %53 = dma.done [#allocation3], 128
    $region25: #{tpu_custom_call.1} parent=1 // pred_fallthru
      _
    // Predicated region
    $region26: #{tpu_custom_call.1} parent=1 // pred_check
      _
    $region27: #{tpu_custom_call.1} parent=1 // pred_check_branch
      %55 = sbr.rel (0) target = $region29
    $region28: #{tpu_custom_call.1} parent=1 // pred_region
      %56 = dma.done [#allocation6], 256
    $region29: #{tpu_custom_call.1} parent=1 // pred_fallthru
      _
    // Predicated region
    $region30: #{tpu_custom_call.1} parent=1 // pred_check
      _
    $region31: #{tpu_custom_call.1} parent=1 // pred_check_branch
      %58 = sbr.rel (0) target = $region33
    $region32: #{tpu_custom_call.1} parent=1 // pred_region
      %59 = dma.done [#allocation6], 1024
    $region33: #{tpu_custom_call.1} parent=1 // pred_fallthru
      _
    %v61 = vld [vmem:[#allocation2] sm:$0xff]
    %v62 = vpack.c.bf16 %v61, %v61
    %v63 = vld [vmem:[#allocation5] sm:$0xf]
    %v64 = vld [vmem:[#allocation5 + $0x4] sm:$0xf]
    %v65 = vld [vmem:[#allocation5 + $0x8] sm:$0xf]
    %v66 = vld [vmem:[#allocation5 + $0xc] sm:$0xf]
    %v67 = vld [vmem:[%s2] sm:$0x1]
    %v69 = vlaneseq
    %v70 = vshrl.u32 %v69, 7
    %v71 = vsub.s32 0, %v70
    %v72 = vrot.slane %v67, %v71
    %v78 = vunpack.c.l.b16 %v63
    %v79 = vunpack.c.l.b16 %v64
    %v80 = vunpack.c.l.b16 %v65
    %v81 = vunpack.c.l.b16 %v66
    %v82 = vpack.c.b16 %v79, %v78
    %v83 = vpack.c.b16 %v81, %v80
    %vm86 = vcmask 261120
    %v88 = vsel %vm86, %v62, 0
    %90 = vmatprep.subr.bf16.mxu0 0
    %91 = vmatpush1.bf16.msra.mxu0 %v82
    %92 = vmatprep.subr.bf16.mxu0 0
    %93 = vmatpush1.bf16.msra.mxu0 %v83
    %94 = vmatprep.subr.bf16.mxu0 0
    %95 = vmatpush1.bf16.msra.mxu0 0
    %96 = vmatprep.subr.bf16.mxu0 0
    %97 = vmatpush1.bf16.msra.mxu0 0
    %98 = vmatprep.subr.bf16.mxu0 0
    %99 = vmatpush1.bf16.msra.mxu0 0
    %100 = vmatprep.subr.bf16.mxu0 0
    %101 = vmatpush1.bf16.msra.mxu0 0
    %102 = vmatprep.subr.bf16.mxu0 0
    %103 = vmatpush1.bf16.msra.mxu0 0
    %104 = vmatprep.subr.bf16.mxu0 0
    %105 = vmatpush1.bf16.msra.mxu0 0
    %106 = vmatprep.subr.bf16.mxu0 0
    %107 = vmatpush1.bf16.msra.mxu0 0
    %108 = vmatprep.subr.bf16.mxu0 0
    %109 = vmatpush1.bf16.msra.mxu0 0
    %110 = vmatprep.subr.bf16.mxu0 0
    %111 = vmatpush1.bf16.msra.mxu0 0
    %112 = vmatprep.subr.bf16.mxu0 0
    %113 = vmatpush1.bf16.msra.mxu0 0
    %114 = vmatprep.subr.bf16.mxu0 0
    %115 = vmatpush1.bf16.msra.mxu0 0
    %116 = vmatprep.subr.bf16.mxu0 0
    %117 = vmatpush1.bf16.msra.mxu0 0
    %118 = vmatprep.subr.bf16.mxu0 0
    %119 = vmatpush1.bf16.msra.mxu0 0
    %120 = vmatprep.subr.bf16.mxu0 0
    %121 = vmatpush1.bf16.msra.mxu0 0
    %122 = vmatprep.mubr.bf16.mxu0 0
    %123 = vmatmul.mubr.bf16.gmra.mrb[0].mxu0 %v88
    %v124 = vpop.f32.mrb[0].mxu0
    %v125 = vadd.f32 %v72, %v124
    %v126 = vpop.f32.mrb[0].mxu0
    %v127 = vpop.f32.mrb[0].mxu0
    %v128 = vpop.f32.mrb[0].mxu0
    %129 = vdwg.mxu0
    %v130 = vmax.f32 %v125, 0.0
    %v131 = vpack.c.bf16 %v130, %v130
    %v132 = vld [vmem:[#allocation7] sm:$0xf]
    %v133 = vld [vmem:[#allocation7 + $0x4] sm:$0xf]
    %v134 = vld [vmem:[#allocation7 + $0x8] sm:$0xf]
    %v135 = vld [vmem:[#allocation7 + $0xc] sm:$0xf]
    %v136 = vld [vmem:[#allocation7 + $0x10] sm:$0xf]
    %v137 = vld [vmem:[#allocation7 + $0x14] sm:$0xf]
    %v138 = vld [vmem:[#allocation7 + $0x18] sm:$0xf]
    %v139 = vld [vmem:[#allocation7 + $0x1c] sm:$0xf]
    %v140 = vld [vmem:[#allocation7 + $0x20] sm:$0xf]
    %v141 = vld [vmem:[#allocation7 + $0x24] sm:$0xf]
    %v142 = vld [vmem:[#allocation7 + $0x28] sm:$0xf]
    %v143 = vld [vmem:[#allocation7 + $0x2c] sm:$0xf]
    %v144 = vld [vmem:[#allocation7 + $0x30] sm:$0xf]
    %v145 = vld [vmem:[#allocation7 + $0x34] sm:$0xf]
    %v146 = vld [vmem:[#allocation7 + $0x38] sm:$0xf]
    %v147 = vld [vmem:[#allocation7 + $0x3c] sm:$0xf]
    %v148 = vld [vmem:[%s4] sm:$0x1]
    %v150 = vlaneseq
    %v151 = vshrl.u32 %v150, 7
    %v152 = vsub.s32 0, %v151
    %v153 = vrot.slane %v148, %v152
    %v171 = vunpack.c.l.b16 %v132
    %v172 = vunpack.c.l.b16 %v133
    %v173 = vunpack.c.l.b16 %v134
    %v174 = vunpack.c.l.b16 %v135
    %v175 = vunpack.c.l.b16 %v136
    %v176 = vunpack.c.l.b16 %v137
    %v177 = vunpack.c.l.b16 %v138
    %v178 = vunpack.c.l.b16 %v139
    %v179 = vunpack.c.l.b16 %v140
    %v180 = vunpack.c.l.b16 %v141
    %v181 = vunpack.c.l.b16 %v142
    %v182 = vunpack.c.l.b16 %v143
    %v183 = vunpack.c.l.b16 %v144
    %v184 = vunpack.c.l.b16 %v145
    %v185 = vunpack.c.l.b16 %v146
    %v186 = vunpack.c.l.b16 %v147
    %v187 = vpack.c.b16 %v172, %v171
    %v188 = vpack.c.b16 %v174, %v173
    %v189 = vpack.c.b16 %v176, %v175
    %v190 = vpack.c.b16 %v178, %v177
    %v191 = vpack.c.b16 %v180, %v179
    %v192 = vpack.c.b16 %v182, %v181
    %v193 = vpack.c.b16 %v184, %v183
    %v194 = vpack.c.b16 %v186, %v185
    %203 = vmatprep.subr.bf16.mxu0 0
    %204 = vmatpush1.bf16.msra.mxu0 %v187
    %205 = vmatprep.subr.bf16.mxu0 0
    %206 = vmatpush1.bf16.msra.mxu0 %v188
    %207 = vmatprep.subr.bf16.mxu0 0
    %208 = vmatpush1.bf16.msra.mxu0 %v189
    %209 = vmatprep.subr.bf16.mxu0 0
    %210 = vmatpush1.bf16.msra.mxu0 %v190
    %211 = vmatprep.subr.bf16.mxu0 0
    %212 = vmatpush1.bf16.msra.mxu0 %v191
    %213 = vmatprep.subr.bf16.mxu0 0
    %214 = vmatpush1.bf16.msra.mxu0 %v192
    %215 = vmatprep.subr.bf16.mxu0 0
    %216 = vmatpush1.bf16.msra.mxu0 %v193
    %217 = vmatprep.subr.bf16.mxu0 0
    %218 = vmatpush1.bf16.msra.mxu0 %v194
    %219 = vmatprep.subr.bf16.mxu0 0
    %220 = vmatpush1.bf16.msra.mxu0 0
    %221 = vmatprep.subr.bf16.mxu0 0
    %222 = vmatpush1.bf16.msra.mxu0 0
    %223 = vmatprep.subr.bf16.mxu0 0
    %224 = vmatpush1.bf16.msra.mxu0 0
    %225 = vmatprep.subr.bf16.mxu0 0
    %226 = vmatpush1.bf16.msra.mxu0 0
    %227 = vmatprep.subr.bf16.mxu0 0
    %228 = vmatpush1.bf16.msra.mxu0 0
    %229 = vmatprep.subr.bf16.mxu0 0
    %230 = vmatpush1.bf16.msra.mxu0 0
    %231 = vmatprep.subr.bf16.mxu0 0
    %232 = vmatpush1.bf16.msra.mxu0 0
    %233 = vmatprep.subr.bf16.mxu0 0
    %234 = vmatpush1.bf16.msra.mxu0 0
    %235 = vmatprep.mubr.bf16.mxu0 0
    %236 = vmatmul.mubr.bf16.gmra.mrb[0].mxu0 %v131
    %v237 = vpop.f32.mrb[0].mxu0
    %v238 = vadd.f32 %v153, %v237
    %v239 = vpop.f32.mrb[0].mxu0
    %v240 = vpop.f32.mrb[0].mxu0
    %v241 = vpop.f32.mrb[0].mxu0
    %242 = vdwg.mxu0
    %243 = vst [vmem:[#allocation8] sm:$0xff] %v238
    // Predicated region
    $region34: #{tpu_custom_call.1} parent=1 // pred_check
      _
    $region35: #{tpu_custom_call.1} parent=1 // pred_check_branch
      %245 = sbr.rel (0) target = $region37
    $region36: #{tpu_custom_call.1} parent=1 // pred_region
      %s247 = ssub.s32 128, 128
      %248 = vsyncadd [#allocation4], %s247
      %s250 = sshll.u32 [#allocation8], 4
      %s251 = int_to_ptr.vmem [resolvable:$true] %s250
      %253 = dma.vmem_to_hbm [thread:$0]  %s251, 128, %s5, [#allocation4]
    $region37: #{tpu_custom_call.1} parent=1 // pred_fallthru
      _
    // Predicated region
    $region38: #{tpu_custom_call.1} parent=1 // pred_check
      _
    $region39: #{tpu_custom_call.1} parent=1 // pred_check_branch
      %255 = sbr.rel (0) target = $region41
    $region40: #{tpu_custom_call.1} parent=1 // pred_region
      %256 = dma.done [#allocation4], 128
    $region41: #{tpu_custom_call.1} parent=1 // pred_fallthru
      _
    %257 = vsyncpa [#allocation3], 1
    %258 = vsyncpa [#allocation6], 1
    %259 = vsyncpa [#allocation4], 1

</llo_original>
